<compile_context>
chip_gen: v7x
topology: tpu7x:2x2x1
jax: 0.10.0
libtpu: 0.0.40
codegen_flags: <defaults>
</compile_context>

<pallas_src>
import numpy as np
import jax
import jax.numpy as jnp
from jax.experimental import pallas as pl
from jax.experimental.pallas import tpu as pltpu


# ----------------------------------------------------------------------------
# Pallas kernel: fused 3-layer MLP over edge rows
# ----------------------------------------------------------------------------
def _conn_mlp_kernel(x_ref, w1_ref, b1_ref, w2_ref, b2_ref, w3_ref, b3_ref,
                     o_ref):
    f32 = jnp.float32
    # layer 1: single K=64 dot (merged [x_i | x_j | z | agg] activation)
    h1 = jnp.dot(x_ref[...], w1_ref[...], preferred_element_type=f32) + b1_ref[...]
    h1 = jnp.maximum(h1, 0.0).astype(jnp.bfloat16)
    # layer 2
    h2 = jnp.dot(h1, w2_ref[...], preferred_element_type=f32) + b2_ref[...]
    h2 = jnp.maximum(h2, 0.0).astype(jnp.bfloat16)
    # layer 3: unpadded num_atoms-wide output, stored f32
    o_ref[...] = jnp.dot(h2, w3_ref[...], preferred_element_type=f32) + b3_ref[...]


def _round_up(x, m):
    return ((x + m - 1) // m) * m


def _pick_tile(E, tile_cap):
    # ~8 grid steps when E is large (>=4 per TC after v7x megacore split),
    # tile >= 512 for DMA efficiency otherwise, multiple of 16 (bf16 sublanes),
    # never larger than (row-padded) E or the user cap.
    tile = max(512, _round_up(pl.cdiv(E, 8), 16))
    tile = min(tile, _round_up(E, 16), int(tile_cap))
    return max(tile, 16)


def _build_conn_mlp_call(E, tile, F_in, H, F, A, weight_mode):
    """weight_mode: pl.Buffered(1) for single-buffered constant weights, or None."""
    def const_spec(shape):
        if weight_mode is None:
            return pl.BlockSpec(shape, lambda i: (0, 0))
        return pl.BlockSpec(shape, lambda i: (0, 0), pipeline_mode=weight_mode)

    in_specs = [
        pl.BlockSpec((tile, F_in), lambda i: (i, 0)),  # merged activation (bf16)
        const_spec((F_in, H)),                         # W1 (bf16)
        const_spec((1, H)),                            # b1 (f32)
        const_spec((H, F)),                            # W2 (bf16)
        const_spec((1, F)),                            # b2 (f32)
        const_spec((F, A)),                            # W3 (bf16, unpadded)
        const_spec((1, A)),                            # b3 (f32, unpadded)
    ]
    return pl.pallas_call(
        _conn_mlp_kernel,
        out_shape=jax.ShapeDtypeStruct((E, A), jnp.float32),
        grid_spec=pltpu.PrefetchScalarGridSpec(
            num_scalar_prefetch=0,
            grid=(pl.cdiv(E, tile),),
            in_specs=in_specs,
            out_specs=pl.BlockSpec((tile, A), lambda i: (i, 0)),
        ),
        compiler_params=pltpu.CompilerParams(
            dimension_semantics=("parallel",),
            vmem_limit_bytes=32 * 1024 * 1024,
        ),
    )


def connectivity_mlp_pallas(acts, w1, b1, w2, b2, w3, b3, *, tile_e=1024):
    """Fused 3-layer MLP over edge rows. acts: [E, F_in] bf16. Returns [E, A] f32."""
    E, F_in = acts.shape
    H = w1.shape[1]
    F = w2.shape[1]
    A = w3.shape[1]
    tile = _pick_tile(E, tile_e)

    args = (acts, w1, b1, w2, b2, w3, b3)
    shapes = [jax.ShapeDtypeStruct(a.shape, a.dtype) for a in args]

    # Decide pipeline_mode at trace/lower/compile time on abstract shapes only;
    # the executed call below is never wrapped in an exception handler.
    weight_mode = pl.Buffered(1)
    try:
        jax.jit(
            _build_conn_mlp_call(E, tile, F_in, H, F, A, weight_mode)
        ).lower(*shapes).compile()
    except Exception:
        weight_mode = None  # this JAX build rejects single-buffered pipeline_mode

    return _build_conn_mlp_call(E, tile, F_in, H, F, A, weight_mode)(*args)


# ----------------------------------------------------------------------------
# Glue: forward_train semantics
# ----------------------------------------------------------------------------
def build_edge_index(num_nodes_hgraph):
    """block_diag(ones(n,n)).nonzero() -> [E, 2] int array, plus the
    permutation mapping each edge (i,j) to its transpose edge (j,i)."""
    rows, cols, perm = [], [], []
    node_off = 0
    edge_off = 0
    for n in num_nodes_hgraph:
        ii = np.repeat(np.arange(n), n)
        jj = np.tile(np.arange(n), n)
        rows.append(node_off + ii)
        cols.append(node_off + jj)
        perm.append(edge_off + jj * n + ii)   # transpose edge position
        node_off += n
        edge_off += n * n
    ei = np.stack([np.concatenate(rows), np.concatenate(cols)], axis=1).astype(np.int32)
    return ei, np.concatenate(perm).astype(np.int32)


def shape_connectivity_forward_train(
    batch, z_graph, params, num_nodes_hgraph, node_aggregation="mean"
):
    # node features: [shape_id_emb | shape_mult_emb]
    id_emb = jnp.take(params["shape_id_emb"], batch["shape_node_idx"], axis=0)
    mult_emb = jnp.take(params["shape_mult_emb"], batch["shape_node_mult"], axis=0)
    x = jnp.concatenate([id_emb, mult_emb], axis=-1)          # [N, d]
    G = len(num_nodes_hgraph)

    # per-graph aggregation of node embeddings (torch.mean / torch.sum)
    agg_fn = {"mean": jnp.mean, "sum": jnp.sum}[node_aggregation]
    offs = np.concatenate([[0], np.cumsum(num_nodes_hgraph)])
    shape_set_emb_agg = jnp.stack(
        [agg_fn(x[offs[g]:offs[g + 1]], axis=0) for g in range(G)]
    )                                                          # [G, d]

    edge_index, transpose_perm = build_edge_index(num_nodes_hgraph)  # [E,2]
    num_conn = np.asarray(num_nodes_hgraph, np.int64) ** 2
    graph_of_edge = jnp.asarray(np.repeat(np.arange(G), num_conn))

    # Cast tiny source tables to bf16 BEFORE the gathers, then build the single
    # merged [E, 3d+latent] activation (feature order matches torch.cat:
    # x_i | x_j | z | agg).
    x_bf = x.astype(jnp.bfloat16)
    z_bf = z_graph.astype(jnp.bfloat16)
    agg_bf = shape_set_emb_agg.astype(jnp.bfloat16)
    acts = jnp.concatenate(
        [
            jnp.take(x_bf, jnp.asarray(edge_index[:, 0]), axis=0),   # [E, d]
            jnp.take(x_bf, jnp.asarray(edge_index[:, 1]), axis=0),   # [E, d]
            jnp.take(z_bf, graph_of_edge, axis=0),                   # [E, latent]
            jnp.take(agg_bf, graph_of_edge, axis=0),                 # [E, d]
        ],
        axis=-1,
    )                                                                # [E, F_in] bf16

    logits = connectivity_mlp_pallas(
        acts,
        params["w1"].astype(jnp.bfloat16), params["b1"],
        params["w2"].astype(jnp.bfloat16), params["b2"],
        params["w3"].astype(jnp.bfloat16), params["b3"],
    )                                                                # [E, A] f32

    # _to_symmetric: average each edge value with its transpose edge value
    logits_sym = 0.5 * (logits + logits[jnp.asarray(transpose_perm)])

    return dict(
        connectivity_logits_edge_index=jnp.asarray(edge_index),
        connectivity_logits=logits_sym,
    )


# ----------------------------------------------------------------------------
# Deterministic parameter / input construction and driver
# ----------------------------------------------------------------------------
if __name__ == "__main__":
    # dim_config
    shape_id_dim = 8
    shape_mult_dim = 8
    latent_dim = 16
    d = shape_id_dim + shape_mult_dim                      # 16
    feature_dim = 3 * d + latent_dim                       # 64
    num_atoms = 1 + 7                                      # 1 + feature_sizes['num_atoms']
    num_shape_ids = 10
    num_mults = 5

    num_nodes_hgraph = [3, 5]                              # two hypergraphs
    N = sum(num_nodes_hgraph)
    G = len(num_nodes_hgraph)

    key = jax.random.PRNGKey(0)
    keys = jax.random.split(key, 12)

    params = dict(
        shape_id_emb=jax.random.normal(keys[0], (num_shape_ids, shape_id_dim), jnp.float32) * 0.1,
        shape_mult_emb=jax.random.normal(keys[1], (num_mults, shape_mult_dim), jnp.float32) * 0.1,
        w1=jax.random.normal(keys[2], (feature_dim, 2 * feature_dim), jnp.float32) * 0.05,
        b1=jax.random.normal(keys[3], (1, 2 * feature_dim), jnp.float32) * 0.01,
        w2=jax.random.normal(keys[4], (2 * feature_dim, feature_dim), jnp.float32) * 0.05,
        b2=jax.random.normal(keys[5], (1, feature_dim), jnp.float32) * 0.01,
        w3=jax.random.normal(keys[6], (feature_dim, num_atoms), jnp.float32) * 0.05,
        b3=jax.random.normal(keys[7], (1, num_atoms), jnp.float32) * 0.01,
    )

    batch = dict(
        shape_node_idx=jax.random.randint(keys[8], (N,), 0, num_shape_ids),
        shape_node_mult=jax.random.randint(keys[9], (N,), 0, num_mults),
    )
    z_graph = jax.random.normal(keys[10], (G, latent_dim), jnp.float32)

    out = shape_connectivity_forward_train(
        batch, z_graph, params, num_nodes_hgraph, node_aggregation="mean"
    )
    logits = jax.block_until_ready(out["connectivity_logits"])

    # sanity: shape [E, num_atoms] and exactly symmetric across (i,j)<->(j,i)
    E = sum(n * n for n in num_nodes_hgraph)
    assert logits.shape == (E, num_atoms)
    ei, perm = build_edge_index(num_nodes_hgraph)
    assert bool(jnp.allclose(logits, logits[jnp.asarray(perm)], atol=1e-6))

    # pure-JAX f32 reference of the whole forward_train path (validates the
    # Pallas kernel, the merged K=64 layer-1 activation and the unpadded
    # output; bf16 MXU operands => loose tolerance).
    id_emb = jnp.take(params["shape_id_emb"], batch["shape_node_idx"], axis=0)
    mult_emb = jnp.take(params["shape_mult_emb"], batch["shape_node_mult"], axis=0)
    x_f32 = jnp.concatenate([id_emb, mult_emb], axis=-1)
    offs = np.concatenate([[0], np.cumsum(num_nodes_hgraph)])
    agg_f32 = jnp.stack([jnp.mean(x_f32[offs[g]:offs[g + 1]], axis=0) for g in range(G)])
    num_conn = np.asarray(num_nodes_hgraph) ** 2
    goe = np.repeat(np.arange(G), num_conn)
    mlp_in = jnp.concatenate(
        [x_f32[ei[:, 0]], x_f32[ei[:, 1]], z_graph[goe], agg_f32[goe]], axis=-1)
    h = jnp.maximum(mlp_in @ params["w1"] + params["b1"], 0.0)
    h = jnp.maximum(h @ params["w2"] + params["b2"], 0.0)
    ref = h @ params["w3"] + params["b3"]
    ref_sym = 0.5 * (ref + ref[jnp.asarray(perm)])
    assert bool(jnp.allclose(logits, ref_sym, atol=2e-2, rtol=2e-2))

    print("KERNEL_OK")
</pallas_src>

<mosaic_0001>
module attributes {stable_mosaic.version = 11 : i64} {
  func.func @_conn_mlp_kernel(%arg0: i32, %arg1: memref<48x64xbf16, #tpu.memory_space<vmem>>, %arg2: memref<64x128xbf16, #tpu.memory_space<vmem>>, %arg3: memref<1x128xf32, #tpu.memory_space<vmem>>, %arg4: memref<128x64xbf16, #tpu.memory_space<vmem>>, %arg5: memref<1x64xf32, #tpu.memory_space<vmem>>, %arg6: memref<64x8xbf16, #tpu.memory_space<vmem>>, %arg7: memref<1x8xf32, #tpu.memory_space<vmem>>, %arg8: memref<48x8xf32, #tpu.memory_space<vmem>>) attributes {dimension_semantics = [#tpu.dimension_semantics<parallel>], iteration_bounds = array<i64: 1>, scalar_prefetch = 0 : i64, scratch_operands = 0 : i64, tpu.core_type = #tpu.core_type<tc>, window_params = [{transform_indices = @transform_0, window_bounds = array<i64: 48, 64>}, {pipeline_mode = #tpu.pipeline_mode<synchronous>, transform_indices = @transform_1, window_bounds = array<i64: 64, 128>}, {pipeline_mode = #tpu.pipeline_mode<synchronous>, transform_indices = @transform_2, window_bounds = array<i64: 1, 128>}, {pipeline_mode = #tpu.pipeline_mode<synchronous>, transform_indices = @transform_3, window_bounds = array<i64: 128, 64>}, {pipeline_mode = #tpu.pipeline_mode<synchronous>, transform_indices = @transform_4, window_bounds = array<i64: 1, 64>}, {pipeline_mode = #tpu.pipeline_mode<synchronous>, transform_indices = @transform_5, window_bounds = array<i64: 64, 8>}, {pipeline_mode = #tpu.pipeline_mode<synchronous>, transform_indices = @transform_6, window_bounds = array<i64: 1, 8>}, {transform_indices = @transform_7, window_bounds = array<i64: 48, 8>}]} {
    %c0 = arith.constant 0 : index
    %c0_0 = arith.constant 0 : index
    %0 = vector.load %arg1[%c0, %c0_0] : memref<48x64xbf16, #tpu.memory_space<vmem>>, vector<48x64xbf16>
    %c0_1 = arith.constant 0 : index
    %c0_2 = arith.constant 0 : index
    %1 = vector.load %arg2[%c0_1, %c0_2] : memref<64x128xbf16, #tpu.memory_space<vmem>>, vector<64x128xbf16>
    %cst = arith.constant dense<0.000000e+00> : vector<48x128xf32>
    %2 = tpu.matmul %0, %1, %cst {dimension_numbers = #tpu.dot_dimension_numbers<[1], [0], [0], [1], [0, 0, 1, 1], [], []>} : vector<48x64xbf16>, vector<64x128xbf16>, vector<48x128xf32> -> vector<48x128xf32>
    %c0_3 = arith.constant 0 : index
    %c0_4 = arith.constant 0 : index
    %3 = vector.load %arg3[%c0_3, %c0_4] : memref<1x128xf32, #tpu.memory_space<vmem>>, vector<1x128xf32>
    %4 = vector.broadcast %3 : vector<1x128xf32> to vector<48x128xf32>
    %5 = arith.addf %2, %4 : vector<48x128xf32>
    %cst_5 = arith.constant 0.000000e+00 : f32
    %6 = vector.broadcast %cst_5 : f32 to vector<48x128xf32>
    %7 = arith.maximumf %5, %6 : vector<48x128xf32>
    %8 = arith.truncf %7 : vector<48x128xf32> to vector<48x128xbf16>
    %c0_6 = arith.constant 0 : index
    %c0_7 = arith.constant 0 : index
    %9 = vector.load %arg4[%c0_6, %c0_7] : memref<128x64xbf16, #tpu.memory_space<vmem>>, vector<128x64xbf16>
    %cst_8 = arith.constant dense<0.000000e+00> : vector<48x64xf32>
    %10 = tpu.matmul %8, %9, %cst_8 {dimension_numbers = #tpu.dot_dimension_numbers<[1], [0], [0], [1], [0, 0, 1, 1], [], []>} : vector<48x128xbf16>, vector<128x64xbf16>, vector<48x64xf32> -> vector<48x64xf32>
    %c0_9 = arith.constant 0 : index
    %c0_10 = arith.constant 0 : index
    %11 = vector.load %arg5[%c0_9, %c0_10] : memref<1x64xf32, #tpu.memory_space<vmem>>, vector<1x64xf32>
    %12 = vector.broadcast %11 : vector<1x64xf32> to vector<48x64xf32>
    %13 = arith.addf %10, %12 : vector<48x64xf32>
    %cst_11 = arith.constant 0.000000e+00 : f32
    %14 = vector.broadcast %cst_11 : f32 to vector<48x64xf32>
    %15 = arith.maximumf %13, %14 : vector<48x64xf32>
    %16 = arith.truncf %15 : vector<48x64xf32> to vector<48x64xbf16>
    %c0_12 = arith.constant 0 : index
    %c0_13 = arith.constant 0 : index
    %17 = vector.load %arg6[%c0_12, %c0_13] : memref<64x8xbf16, #tpu.memory_space<vmem>>, vector<64x8xbf16>
    %cst_14 = arith.constant dense<0.000000e+00> : vector<48x8xf32>
    %18 = tpu.matmul %16, %17, %cst_14 {dimension_numbers = #tpu.dot_dimension_numbers<[1], [0], [0], [1], [0, 0, 1, 1], [], []>} : vector<48x64xbf16>, vector<64x8xbf16>, vector<48x8xf32> -> vector<48x8xf32>
    %c0_15 = arith.constant 0 : index
    %c0_16 = arith.constant 0 : index
    %19 = vector.load %arg7[%c0_15, %c0_16] : memref<1x8xf32, #tpu.memory_space<vmem>>, vector<1x8xf32>
    %20 = vector.broadcast %19 : vector<1x8xf32> to vector<48x8xf32>
    %21 = arith.addf %18, %20 : vector<48x8xf32>
    %c0_17 = arith.constant 0 : index
    %c0_18 = arith.constant 0 : index
    %22 = vector.load %arg8[%c0_17, %c0_18] : memref<48x8xf32, #tpu.memory_space<vmem>>, vector<48x8xf32>
    tpu.vector_store %arg8[%c0_17, %c0_18], %21 {strides = array<i32>} : memref<48x8xf32, #tpu.memory_space<vmem>>, vector<48x8xf32>,
    return
  }
  func.func @transform_0(%arg0: i32) -> (i32, i32) {
    %c0_i32 = arith.constant 0 : i32
    %c0_i32_0 = arith.constant 0 : i32
    return %arg0, %c0_i32 : i32, i32
  }
  func.func @transform_1(%arg0: i32) -> (i32, i32) {
    %c0_i32 = arith.constant 0 : i32
    %c0_i32_0 = arith.constant 0 : i32
    %c0_i32_1 = arith.constant 0 : i32
    return %c0_i32, %c0_i32_0 : i32, i32
  }
  func.func @transform_2(%arg0: i32) -> (i32, i32) {
    %c0_i32 = arith.constant 0 : i32
    %c0_i32_0 = arith.constant 0 : i32
    %c0_i32_1 = arith.constant 0 : i32
    return %c0_i32, %c0_i32_0 : i32, i32
  }
  func.func @transform_3(%arg0: i32) -> (i32, i32) {
    %c0_i32 = arith.constant 0 : i32
    %c0_i32_0 = arith.constant 0 : i32
    %c0_i32_1 = arith.constant 0 : i32
    return %c0_i32, %c0_i32_0 : i32, i32
  }
  func.func @transform_4(%arg0: i32) -> (i32, i32) {
    %c0_i32 = arith.constant 0 : i32
    %c0_i32_0 = arith.constant 0 : i32
    %c0_i32_1 = arith.constant 0 : i32
    return %c0_i32, %c0_i32_0 : i32, i32
  }
  func.func @transform_5(%arg0: i32) -> (i32, i32) {
    %c0_i32 = arith.constant 0 : i32
    %c0_i32_0 = arith.constant 0 : i32
    %c0_i32_1 = arith.constant 0 : i32
    return %c0_i32, %c0_i32_0 : i32, i32
  }
  func.func @transform_6(%arg0: i32) -> (i32, i32) {
    %c0_i32 = arith.constant 0 : i32
    %c0_i32_0 = arith.constant 0 : i32
    %c0_i32_1 = arith.constant 0 : i32
    return %c0_i32, %c0_i32_0 : i32, i32
  }
  func.func @transform_7(%arg0: i32) -> (i32, i32) {
    %c0_i32 = arith.constant 0 : i32
    %c0_i32_0 = arith.constant 0 : i32
    return %arg0, %c0_i32 : i32, i32
  }
}

</mosaic_0001>

<llo_original>
// kernel: tpu_custom_call.1
$region0: #{tpu_custom_call.1}
  #allocation0 [shape = 'u32[]', space=smem, size = 0x4, offset = 0x4, fixed_abs, tag = 'smem constant byte address 0x4 - core index']
  #allocation1 [shape = 'u32[144,128]{1,0:T(1,128)}', space=vmem, size = 0x12000, scoped, tag = 'internal scratch']
  %s0 = inlined_call_operand.vmem [shape: bf16[34,64], index: 0, kind: input, shape index: {}]
  %s1 = inlined_call_operand.vmem [shape: bf16[64,128], index: 1, kind: input, shape index: {}]
  %s2 = inlined_call_operand.vmem [shape: f32[1,128], index: 2, kind: input, shape index: {}]
  %s3 = inlined_call_operand.vmem [shape: bf16[128,64], index: 3, kind: input, shape index: {}]
  %s4 = inlined_call_operand.vmem [shape: f32[1,64], index: 4, kind: input, shape index: {}]
  %s5 = inlined_call_operand.vmem [shape: bf16[64,8], index: 5, kind: input, shape index: {}]
  %s6 = inlined_call_operand.vmem [shape: f32[1,8], index: 6, kind: input, shape index: {}]
  %s7 = inlined_call_operand.vmem [shape: f32[34,8], index: 7, kind: output, shape index: {}]
  %s8 = sld [smem:[#allocation0]]
  $region72: #{tpu_custom_call.1} parent=0
    _
  %s10 = ssub.s32 1, %s8
  %s11 = scalar_select 0, %s10, %s8
  $region1: #{tpu_custom_call.1} parent=0
    #allocation2 [shape = 'u8[24576]{0}', space=vmem, size = 0x6000, scoped, tag = 'output window, operand 0, single buffered']
    // Predicated region
    $region2: #{tpu_custom_call.1} parent=1 // pred_check
      _
    $region3: #{tpu_custom_call.1} parent=1 // pred_check_branch
      %13 = sbr.rel (0) target = $region5
    $region4: #{tpu_custom_call.1} parent=1 // pred_region
      _
    $region5: #{tpu_custom_call.1} parent=1 // pred_fallthru
      _
    // Predicated region
    $region6: #{tpu_custom_call.1} parent=1 // pred_check
      _
    $region7: #{tpu_custom_call.1} parent=1 // pred_check_branch
      %15 = sbr.rel (0) target = $region9
    $region8: #{tpu_custom_call.1} parent=1 // pred_region
      _
    $region9: #{tpu_custom_call.1} parent=1 // pred_fallthru
      _
    // Predicated region
    $region10: #{tpu_custom_call.1} parent=1 // pred_check
      _
    $region11: #{tpu_custom_call.1} parent=1 // pred_check_branch
      %17 = sbr.rel (0) target = $region13
    $region12: #{tpu_custom_call.1} parent=1 // pred_region
      _
    $region13: #{tpu_custom_call.1} parent=1 // pred_fallthru
      _
    // Predicated region
    $region14: #{tpu_custom_call.1} parent=1 // pred_check
      _
    $region15: #{tpu_custom_call.1} parent=1 // pred_check_branch
      %19 = sbr.rel (0) target = $region17
    $region16: #{tpu_custom_call.1} parent=1 // pred_region
      _
    $region17: #{tpu_custom_call.1} parent=1 // pred_fallthru
      _
    // Predicated region
    $region18: #{tpu_custom_call.1} parent=1 // pred_check
      _
    $region19: #{tpu_custom_call.1} parent=1 // pred_check_branch
      %21 = sbr.rel (0) target = $region21
    $region20: #{tpu_custom_call.1} parent=1 // pred_region
      _
    $region21: #{tpu_custom_call.1} parent=1 // pred_fallthru
      _
    // Predicated region
    $region22: #{tpu_custom_call.1} parent=1 // pred_check
      _
    $region23: #{tpu_custom_call.1} parent=1 // pred_check_branch
      %23 = sbr.rel (0) target = $region25
    $region24: #{tpu_custom_call.1} parent=1 // pred_region
      _
    $region25: #{tpu_custom_call.1} parent=1 // pred_fallthru
      _
    // Predicated region
    $region26: #{tpu_custom_call.1} parent=1 // pred_check
      _
    $region27: #{tpu_custom_call.1} parent=1 // pred_check_branch
      %25 = sbr.rel (0) target = $region29
    $region28: #{tpu_custom_call.1} parent=1 // pred_region
      _
    $region29: #{tpu_custom_call.1} parent=1 // pred_fallthru
      _
    %v27 = vld [vmem:[%s0] sm:$0xf]
    %v28 = vld [vmem:[%s0 + $0x4] sm:$0xf]
    %v29 = vld [vmem:[%s0 + $0x8] sm:$0xf]
    %v30 = vld [vmem:[%s0 + $0xc] sm:$0xf]
    %v31 = vld [vmem:[%s0 + $0x10] sm:$0xf]
    %v32 = vld [vmem:[%s0 + $0x14] sm:$0xf]
    %v33 = vld [vmem:[%s1] sm:$0xf]
    %v34 = vld [vmem:[%s1 + $0x4] sm:$0xf]
    %v35 = vld [vmem:[%s1 + $0x8] sm:$0xf]
    %v36 = vld [vmem:[%s1 + $0xc] sm:$0xf]
    %v37 = vld [vmem:[%s1 + $0x10] sm:$0xf]
    %v38 = vld [vmem:[%s1 + $0x14] sm:$0xf]
    %v39 = vld [vmem:[%s1 + $0x18] sm:$0xf]
    %v40 = vld [vmem:[%s1 + $0x1c] sm:$0xf]
    %v41 = vld [vmem:[%s2] sm:$0x1]
    %v43 = vlaneseq
    %v44 = vshrl.u32 %v43, 7
    %v45 = vsub.s32 0, %v44
    %v46 = vrot.slane %v41, %v45
    %v54 = vunpack.c.l.b16 %v27
    %v55 = vunpack.c.l.b16 %v28
    %v56 = vunpack.c.l.b16 %v29
    %v57 = vunpack.c.l.b16 %v30
    %v58 = vunpack.c.l.b16 %v31
    %v59 = vunpack.c.l.b16 %v32
    %v60 = vpack.c.b16 %v55, %v54
    %v61 = vpack.c.b16 %v57, %v56
    %v62 = vpack.c.b16 %v59, %v58
    %v71 = vunpack.c.l.b16 %v33
    %v72 = vunpack.c.l.b16 %v34
    %v73 = vunpack.c.l.b16 %v35
    %v74 = vunpack.c.l.b16 %v36
    %v75 = vunpack.c.l.b16 %v37
    %v76 = vunpack.c.l.b16 %v38
    %v77 = vunpack.c.l.b16 %v39
    %v78 = vunpack.c.l.b16 %v40
    %v79 = vpack.c.b16 %v72, %v71
    %v80 = vpack.c.b16 %v74, %v73
    %v81 = vpack.c.b16 %v76, %v75
    %v82 = vpack.c.b16 %v78, %v77
    %vm87 = vcmask 523264
    %v89 = vsel %vm87, %v60, 0
    %v92 = vsel %vm87, %v61, 0
    %v95 = vsel %vm87, %v62, 0
    %97 = vmatprep.subr.bf16.mxu0 0
    %98 = vmatpush1.bf16.msra.mxu0 %v79
    %99 = vmatprep.subr.bf16.mxu0 0
    %100 = vmatpush1.bf16.msra.mxu0 %v80
    %101 = vmatprep.subr.bf16.mxu0 0
    %102 = vmatpush1.bf16.msra.mxu0 %v81
    %103 = vmatprep.subr.bf16.mxu0 0
    %104 = vmatpush1.bf16.msra.mxu0 %v82
    %105 = vmatprep.subr.bf16.mxu0 0
    %106 = vmatpush1.bf16.msra.mxu0 0
    %107 = vmatprep.subr.bf16.mxu0 0
    %108 = vmatpush1.bf16.msra.mxu0 0
    %109 = vmatprep.subr.bf16.mxu0 0
    %110 = vmatpush1.bf16.msra.mxu0 0
    %111 = vmatprep.subr.bf16.mxu0 0
    %112 = vmatpush1.bf16.msra.mxu0 0
    %113 = vmatprep.subr.bf16.mxu0 0
    %114 = vmatpush1.bf16.msra.mxu0 0
    %115 = vmatprep.subr.bf16.mxu0 0
    %116 = vmatpush1.bf16.msra.mxu0 0
    %117 = vmatprep.subr.bf16.mxu0 0
    %118 = vmatpush1.bf16.msra.mxu0 0
    %119 = vmatprep.subr.bf16.mxu0 0
    %120 = vmatpush1.bf16.msra.mxu0 0
    %121 = vmatprep.subr.bf16.mxu0 0
    %122 = vmatpush1.bf16.msra.mxu0 0
    %123 = vmatprep.subr.bf16.mxu0 0
    %124 = vmatpush1.bf16.msra.mxu0 0
    %125 = vmatprep.subr.bf16.mxu0 0
    %126 = vmatpush1.bf16.msra.mxu0 0
    %127 = vmatprep.subr.bf16.mxu0 0
    %128 = vmatpush1.bf16.msra.mxu0 0
    %129 = vmatprep.mubr.bf16.mxu0 0
    %130 = vmatmul.mubr.bf16.gmra.mrb[0].mxu0 %v89
    %v131 = vpop.f32.mrb[0].mxu0
    %v132 = vadd.f32 %v46, %v131
    %v133 = vpop.f32.mrb[0].mxu0
    %v134 = vpop.f32.mrb[0].mxu0
    %v135 = vadd.f32 %v46, %v134
    %v136 = vpop.f32.mrb[0].mxu0
    %137 = vmatprep.mubr.bf16.mxu0 0
    %138 = vmatmul.mubr.bf16.gmra.mrb[0].mxu0 %v92
    %v139 = vpop.f32.mrb[0].mxu0
    %v140 = vadd.f32 %v46, %v139
    %v141 = vpop.f32.mrb[0].mxu0
    %v142 = vpop.f32.mrb[0].mxu0
    %v143 = vadd.f32 %v46, %v142
    %v144 = vpop.f32.mrb[0].mxu0
    %145 = vmatprep.mubr.bf16.mxu0 0
    %146 = vmatmul.mubr.bf16.gmra.mrb[0].mxu0 %v95
    %v147 = vpop.f32.mrb[0].mxu0
    %v148 = vadd.f32 %v46, %v147
    %v149 = vpop.f32.mrb[0].mxu0
    %v150 = vpop.f32.mrb[0].mxu0
    %v151 = vadd.f32 %v46, %v150
    %v152 = vpop.f32.mrb[0].mxu0
    %153 = vdwg.mxu0
    %v154 = vmax.f32 %v132, 0.0
    %v155 = vmax.f32 %v135, 0.0
    %v156 = vmax.f32 %v140, 0.0
    %v157 = vmax.f32 %v143, 0.0
    %v158 = vmax.f32 %v148, 0.0
    %v159 = vmax.f32 %v151, 0.0
    %v160 = vpack.c.bf16 %v155, %v154
    %v161 = vpack.c.bf16 %v157, %v156
    %v162 = vpack.c.bf16 %v159, %v158
    %v163 = vld [vmem:[%s3] sm:$0xf]
    %v164 = vld [vmem:[%s3 + $0x4] sm:$0xf]
    %v165 = vld [vmem:[%s3 + $0x8] sm:$0xf]
    %v166 = vld [vmem:[%s3 + $0xc] sm:$0xf]
    %v167 = vld [vmem:[%s3 + $0x10] sm:$0xf]
    %v168 = vld [vmem:[%s3 + $0x14] sm:$0xf]
    %v169 = vld [vmem:[%s3 + $0x18] sm:$0xf]
    %v170 = vld [vmem:[%s3 + $0x1c] sm:$0xf]
    %v171 = vld [vmem:[%s3 + $0x20] sm:$0xf]
    %v172 = vld [vmem:[%s3 + $0x24] sm:$0xf]
    %v173 = vld [vmem:[%s3 + $0x28] sm:$0xf]
    %v174 = vld [vmem:[%s3 + $0x2c] sm:$0xf]
    %v175 = vld [vmem:[%s3 + $0x30] sm:$0xf]
    %v176 = vld [vmem:[%s3 + $0x34] sm:$0xf]
    %v177 = vld [vmem:[%s3 + $0x38] sm:$0xf]
    %v178 = vld [vmem:[%s3 + $0x3c] sm:$0xf]
    %v179 = vld [vmem:[%s4] sm:$0x1]
    %v181 = vlaneseq
    %v182 = vshrl.u32 %v181, 7
    %v183 = vsub.s32 0, %v182
    %v184 = vrot.slane %v179, %v183
    %v202 = vunpack.c.l.b16 %v163
    %v203 = vunpack.c.l.b16 %v164
    %v204 = vunpack.c.l.b16 %v165
    %v205 = vunpack.c.l.b16 %v166
    %v206 = vunpack.c.l.b16 %v167
    %v207 = vunpack.c.l.b16 %v168
    %v208 = vunpack.c.l.b16 %v169
    %v209 = vunpack.c.l.b16 %v170
    %v210 = vunpack.c.l.b16 %v171
    %v211 = vunpack.c.l.b16 %v172
    %v212 = vunpack.c.l.b16 %v173
    %v213 = vunpack.c.l.b16 %v174
    %v214 = vunpack.c.l.b16 %v175
    %v215 = vunpack.c.l.b16 %v176
    %v216 = vunpack.c.l.b16 %v177
    %v217 = vunpack.c.l.b16 %v178
    %v218 = vpack.c.b16 %v203, %v202
    %v219 = vpack.c.b16 %v205, %v204
    %v220 = vpack.c.b16 %v207, %v206
    %v221 = vpack.c.b16 %v209, %v208
    %v222 = vpack.c.b16 %v211, %v210
    %v223 = vpack.c.b16 %v213, %v212
    %v224 = vpack.c.b16 %v215, %v214
    %v225 = vpack.c.b16 %v217, %v216
    %234 = vmatprep.subr.bf16.mxu0 0
    %235 = vmatpush1.bf16.msra.mxu0 %v218
    %236 = vmatprep.subr.bf16.mxu0 0
    %237 = vmatpush1.bf16.msra.mxu0 %v219
    %238 = vmatprep.subr.bf16.mxu0 0
    %239 = vmatpush1.bf16.msra.mxu0 %v220
    %240 = vmatprep.subr.bf16.mxu0 0
    %241 = vmatpush1.bf16.msra.mxu0 %v221
    %242 = vmatprep.subr.bf16.mxu0 0
    %243 = vmatpush1.bf16.msra.mxu0 %v222
    %244 = vmatprep.subr.bf16.mxu0 0
    %245 = vmatpush1.bf16.msra.mxu0 %v223
    %246 = vmatprep.subr.bf16.mxu0 0
    %247 = vmatpush1.bf16.msra.mxu0 %v224
    %248 = vmatprep.subr.bf16.mxu0 0
    %249 = vmatpush1.bf16.msra.mxu0 %v225
    %250 = vmatprep.subr.bf16.mxu0 0
    %251 = vmatpush1.bf16.msra.mxu0 0
    %252 = vmatprep.subr.bf16.mxu0 0
    %253 = vmatpush1.bf16.msra.mxu0 0
    %254 = vmatprep.subr.bf16.mxu0 0
    %255 = vmatpush1.bf16.msra.mxu0 0
    %256 = vmatprep.subr.bf16.mxu0 0
    %257 = vmatpush1.bf16.msra.mxu0 0
    %258 = vmatprep.subr.bf16.mxu0 0
    %259 = vmatpush1.bf16.msra.mxu0 0
    %260 = vmatprep.subr.bf16.mxu0 0
    %261 = vmatpush1.bf16.msra.mxu0 0
    %262 = vmatprep.subr.bf16.mxu0 0
    %263 = vmatpush1.bf16.msra.mxu0 0
    %264 = vmatprep.subr.bf16.mxu0 0
    %265 = vmatpush1.bf16.msra.mxu0 0
    %266 = vmatprep.mubr.bf16.mxu0 0
    %267 = vmatmul.mubr.bf16.gmra.mrb[0].mxu0 %v160
    %v268 = vpop.f32.mrb[0].mxu0
    %v269 = vadd.f32 %v184, %v268
    %v270 = vpop.f32.mrb[0].mxu0
    %v271 = vpop.f32.mrb[0].mxu0
    %v272 = vadd.f32 %v184, %v271
    %v273 = vpop.f32.mrb[0].mxu0
    %274 = vmatprep.mubr.bf16.mxu0 0
    %275 = vmatmul.mubr.bf16.gmra.mrb[0].mxu0 %v161
    %v276 = vpop.f32.mrb[0].mxu0
    %v277 = vadd.f32 %v184, %v276
    %v278 = vpop.f32.mrb[0].mxu0
    %v279 = vpop.f32.mrb[0].mxu0
    %v280 = vadd.f32 %v184, %v279
    %v281 = vpop.f32.mrb[0].mxu0
    %282 = vmatprep.mubr.bf16.mxu0 0
    %283 = vmatmul.mubr.bf16.gmra.mrb[0].mxu0 %v162
    %v284 = vpop.f32.mrb[0].mxu0
    %v285 = vadd.f32 %v184, %v284
    %v286 = vpop.f32.mrb[0].mxu0
    %v287 = vpop.f32.mrb[0].mxu0
    %v288 = vadd.f32 %v184, %v287
    %v289 = vpop.f32.mrb[0].mxu0
    %290 = vdwg.mxu0
    %v291 = vmax.f32 %v269, 0.0
    %v292 = vmax.f32 %v272, 0.0
    %v293 = vmax.f32 %v277, 0.0
    %v294 = vmax.f32 %v280, 0.0
    %v295 = vmax.f32 %v285, 0.0
    %v296 = vmax.f32 %v288, 0.0
    %v297 = vpack.c.bf16 %v292, %v291
    %v298 = vpack.c.bf16 %v294, %v293
    %v299 = vpack.c.bf16 %v296, %v295
    %v300 = vld [vmem:[%s5] sm:$0xf]
    %v301 = vld [vmem:[%s5 + $0x4] sm:$0xf]
    %v302 = vld [vmem:[%s5 + $0x8] sm:$0xf]
    %v303 = vld [vmem:[%s5 + $0xc] sm:$0xf]
    %v304 = vld [vmem:[%s5 + $0x10] sm:$0xf]
    %v305 = vld [vmem:[%s5 + $0x14] sm:$0xf]
    %v306 = vld [vmem:[%s5 + $0x18] sm:$0xf]
    %v307 = vld [vmem:[%s5 + $0x1c] sm:$0xf]
    %v308 = vld [vmem:[%s6] sm:$0x1]
    %v310 = vlaneseq
    %v311 = vshrl.u32 %v310, 7
    %v312 = vsub.s32 0, %v311
    %v313 = vrot.slane %v308, %v312
    %v323 = vunpack.c.l.b16 %v300
    %v324 = vunpack.c.l.b16 %v301
    %v325 = vunpack.c.l.b16 %v302
    %v326 = vunpack.c.l.b16 %v303
    %v327 = vunpack.c.l.b16 %v304
    %v328 = vunpack.c.l.b16 %v305
    %v329 = vunpack.c.l.b16 %v306
    %v330 = vunpack.c.l.b16 %v307
    %v331 = vpack.c.b16 %v324, %v323
    %v332 = vpack.c.b16 %v326, %v325
    %v333 = vpack.c.b16 %v328, %v327
    %v334 = vpack.c.b16 %v330, %v329
    %v340 = vsel %vm87, %v297, 0
    %v343 = vsel %vm87, %v298, 0
    %v346 = vsel %vm87, %v299, 0
    %348 = vmatprep.subr.bf16.mxu0 0
    %349 = vmatpush1.bf16.msra.mxu0 %v331
    %350 = vmatprep.subr.bf16.mxu0 0
    %351 = vmatpush1.bf16.msra.mxu0 %v332
    %352 = vmatprep.subr.bf16.mxu0 0
    %353 = vmatpush1.bf16.msra.mxu0 %v333
    %354 = vmatprep.subr.bf16.mxu0 0
    %355 = vmatpush1.bf16.msra.mxu0 %v334
    %356 = vmatprep.subr.bf16.mxu0 0
    %357 = vmatpush1.bf16.msra.mxu0 0
    %358 = vmatprep.subr.bf16.mxu0 0
    %359 = vmatpush1.bf16.msra.mxu0 0
    %360 = vmatprep.subr.bf16.mxu0 0
    %361 = vmatpush1.bf16.msra.mxu0 0
    %362 = vmatprep.subr.bf16.mxu0 0
    %363 = vmatpush1.bf16.msra.mxu0 0
    %364 = vmatprep.subr.bf16.mxu0 0
    %365 = vmatpush1.bf16.msra.mxu0 0
    %366 = vmatprep.subr.bf16.mxu0 0
    %367 = vmatpush1.bf16.msra.mxu0 0
    %368 = vmatprep.subr.bf16.mxu0 0
    %369 = vmatpush1.bf16.msra.mxu0 0
    %370 = vmatprep.subr.bf16.mxu0 0
    %371 = vmatpush1.bf16.msra.mxu0 0
    %372 = vmatprep.subr.bf16.mxu0 0
    %373 = vmatpush1.bf16.msra.mxu0 0
    %374 = vmatprep.subr.bf16.mxu0 0
    %375 = vmatpush1.bf16.msra.mxu0 0
    %376 = vmatprep.subr.bf16.mxu0 0
    %377 = vmatpush1.bf16.msra.mxu0 0
    %378 = vmatprep.subr.bf16.mxu0 0
    %379 = vmatpush1.bf16.msra.mxu0 0
    %380 = vmatprep.mubr.bf16.mxu0 0
    %381 = vmatmul.mubr.bf16.gmra.mrb[0].mxu0 %v340
    %v382 = vpop.f32.mrb[0].mxu0
    %v383 = vadd.f32 %v313, %v382
    %v384 = vpop.f32.mrb[0].mxu0
    %v385 = vpop.f32.mrb[0].mxu0
    %v386 = vadd.f32 %v313, %v385
    %v387 = vpop.f32.mrb[0].mxu0
    %388 = vmatprep.mubr.bf16.mxu0 0
    %389 = vmatmul.mubr.bf16.gmra.mrb[0].mxu0 %v343
    %v390 = vpop.f32.mrb[0].mxu0
    %v391 = vadd.f32 %v313, %v390
    %v392 = vpop.f32.mrb[0].mxu0
    %v393 = vpop.f32.mrb[0].mxu0
    %v394 = vadd.f32 %v313, %v393
    %v395 = vpop.f32.mrb[0].mxu0
    %396 = vmatprep.mubr.bf16.mxu0 0
    %397 = vmatmul.mubr.bf16.gmra.mrb[0].mxu0 %v346
    %v398 = vpop.f32.mrb[0].mxu0
    %v399 = vadd.f32 %v313, %v398
    %v400 = vpop.f32.mrb[0].mxu0
    %v401 = vpop.f32.mrb[0].mxu0
    %v402 = vadd.f32 %v313, %v401
    %v403 = vpop.f32.mrb[0].mxu0
    %404 = vdwg.mxu0
    %vm405 = vcmask 64512
    %406 = vst.msk [vmem:[#allocation2] sm:$0xff] %vm405, %v383
    %407 = vst.msk [vmem:[#allocation2 + $0x8] sm:$0xff] %vm405, %v386
    %408 = vst.msk [vmem:[#allocation2 + $0x10] sm:$0xff] %vm405, %v391
    %409 = vst.msk [vmem:[#allocation2 + $0x18] sm:$0xff] %vm405, %v394
    %410 = vst.msk [vmem:[#allocation2 + $0x20] sm:$0xff] %vm405, %v399
    %411 = vst.msk [vmem:[#allocation2 + $0x28] sm:$0xff] %vm405, %v402
    // Predicated region
    $region30: #{tpu_custom_call.1} parent=1 // pred_check
      _
    $region31: #{tpu_custom_call.1} parent=1 // pred_check_branch
      %413 = sbr.rel (0) target = $region33
    $region32: #{tpu_custom_call.1} parent=1 // pred_region
      // Predicated region
      $region34: #{tpu_custom_call.1} parent=32 // pred_check
        _
      $region35: #{tpu_custom_call.1} parent=32 // pred_check_branch
        %415 = sbr.rel (0) target = $region37
      $region36: #{tpu_custom_call.1} parent=32 // pred_region
        // Predicated region
        $region38: #{tpu_custom_call.1} parent=36 // pred_check
          _
        $region39: #{tpu_custom_call.1} parent=36 // pred_check_branch
          %417 = sbr.rel (0) target = $region41
        $region40: #{tpu_custom_call.1} parent=36 // pred_region
          // Predicated region
          $region53: #{tpu_custom_call.1} parent=40 // pred_check
            _
          $region54: #{tpu_custom_call.1} parent=40 // pred_check_branch
            %440 = sbr.rel (0) target = $region56
          $region55: #{tpu_custom_call.1} parent=40 // pred_region
            loop: start=0, step=1, limit=1
            $region57: #{tpu_custom_call.1} parent=55 // loop_pre_header
              _
            $region58: #{tpu_custom_call.1} parent=55 // loop_header
              %s442 = sphi 0, %s446
              %p443 = scmp.ge.s32.totalorder %s442, 1
              %s447 = sphi [#allocation2], [#allocation2]
              %s448 = sphi %s7, %s7
            $region59: #{tpu_custom_call.1} parent=55 // loop_header_branch
              %445 = sbr.rel (%p443) target = $region63
            $region60: #{tpu_custom_call.1} parent=55 // loop_body
              %v449 = vld [vmem:[%s447] sm:$0xff]
              %450 = vst [vmem:[%s448] sm:$0xff] %v449
              %v451 = vld [vmem:[%s447 + $0x8] sm:$0xff]
              %452 = vst [vmem:[%s448 + $0x8] sm:$0xff] %v451
              %v453 = vld [vmem:[%s447 + $0x10] sm:$0xff]
              %454 = vst [vmem:[%s448 + $0x10] sm:$0xff] %v453
              %v455 = vld [vmem:[%s447 + $0x18] sm:$0xff]
              %456 = vst [vmem:[%s448 + $0x18] sm:$0xff] %v455
              %v457 = vld [vmem:[%s447 + $0x20] sm:$0xff]
              %458 = vst [vmem:[%s448 + $0x20] sm:$0xff] %v457
            $region61: #{tpu_custom_call.1} parent=55 // loop_footer
              %s446 = sadd.s32 1, %s442
            $region62: #{tpu_custom_call.1} parent=55 // loop_footer_branch
              %441 = sbr.rel target = $region58
            $region63: #{tpu_custom_call.1} parent=55 // loop_exit
              _
          $region56: #{tpu_custom_call.1} parent=40 // pred_fallthru
            _
          // Predicated region
          $region64: #{tpu_custom_call.1} parent=40 // pred_check
            _
          $region65: #{tpu_custom_call.1} parent=40 // pred_check_branch
            %460 = sbr.rel target = $region67
          $region66: #{tpu_custom_call.1} parent=40 // pred_region
            _
          $region67: #{tpu_custom_call.1} parent=40 // pred_fallthru
            _
        $region41: #{tpu_custom_call.1} parent=36 // pred_fallthru
          _
        // Predicated region
        $region42: #{tpu_custom_call.1} parent=36 // pred_check
          _
        $region43: #{tpu_custom_call.1} parent=36 // pred_check_branch
          %419 = sbr.rel target = $region45
        $region44: #{tpu_custom_call.1} parent=36 // pred_region
          loop: start=0, step=1, limit=1
          $region46: #{tpu_custom_call.1} parent=44 // loop_pre_header
            _
          $region47: #{tpu_custom_call.1} parent=44 // loop_header
            %s422 = sphi 0, %s426
            %p423 = scmp.ge.s32.totalorder %s422, 1
            %s427 = sphi [#allocation2], [#allocation2]
            %s428 = sphi %s7, %s7
          $region48: #{tpu_custom_call.1} parent=44 // loop_header_branch
            %425 = sbr.rel (%p423) target = $region52
          $region49: #{tpu_custom_call.1} parent=44 // loop_body
            %v429 = vld [vmem:[%s427] sm:$0xff]
            %430 = vst [vmem:[%s428] sm:$0xff] %v429
            %v431 = vld [vmem:[%s427 + $0x8] sm:$0xff]
            %432 = vst [vmem:[%s428 + $0x8] sm:$0xff] %v431
            %v433 = vld [vmem:[%s427 + $0x10] sm:$0xff]
            %434 = vst [vmem:[%s428 + $0x10] sm:$0xff] %v433
            %v435 = vld [vmem:[%s427 + $0x18] sm:$0xff]
            %436 = vst [vmem:[%s428 + $0x18] sm:$0xff] %v435
            %v437 = vld [vmem:[%s427 + $0x20] sm:$0xff]
            %438 = vst [vmem:[%s428 + $0x20] sm:$0xff] %v437
          $region50: #{tpu_custom_call.1} parent=44 // loop_footer
            %s426 = sadd.s32 1, %s422
          $region51: #{tpu_custom_call.1} parent=44 // loop_footer_branch
            %421 = sbr.rel target = $region47
          $region52: #{tpu_custom_call.1} parent=44 // loop_exit
            _
        $region45: #{tpu_custom_call.1} parent=36 // pred_fallthru
          _
      $region37: #{tpu_custom_call.1} parent=32 // pred_fallthru
        _
      %461 = vnop
    $region33: #{tpu_custom_call.1} parent=1 // pred_fallthru
      _
    // Predicated region
    $region68: #{tpu_custom_call.1} parent=1 // pred_check
      _
    $region69: #{tpu_custom_call.1} parent=1 // pred_check_branch
      %463 = sbr.rel (0) target = $region71
    $region70: #{tpu_custom_call.1} parent=1 // pred_region
      _
    $region71: #{tpu_custom_call.1} parent=1 // pred_fallthru
      _

</llo_original>
